<compile_context>
chip_gen: v7x
topology: tpu7x:2x2x1
jax: 0.10.0
libtpu: 0.0.40
codegen_flags: <defaults>
</compile_context>

<pallas_src>
import functools

import jax
import jax.numpy as jnp
from jax.experimental import pallas as pl
from jax.experimental.pallas import tpu as pltpu

LANE = 128
SUBLANE = 8
CHUNK_ROWS = 32          # rows fused per accumulation step (4 vregs per f32 temporary)
MAX_BLOCK_ROWS = 1024    # rows per grid step (multiple of CHUNK_ROWS); disp block = 2 MiB
NUM_SHARDS = 2           # leading "parallel" grid axis (megacore split on v7x)


def _cdiv(a, b):
    return -(-a // b)


def _round_up(x, m):
    return _cdiv(x, m) * m


def _make_kernel(n_scales, block_rows, tiles_per_shard, valid_rows, need_row_mask):
    """Build the kernel for a given static configuration."""
    n_chunks = block_rows // CHUNK_ROWS
    groups = CHUNK_ROWS // SUBLANE

    def fold(x):
        # (CHUNK_ROWS, LANE) -> (SUBLANE, LANE): vreg-aligned static slices + a
        # tree of elementwise adds -> pure VPU, everything stays in vregs.
        parts = [x[g * SUBLANE:(g + 1) * SUBLANE] for g in range(groups)]
        while len(parts) > 1:
            nxt = [a + b for a, b in zip(parts[0::2], parts[1::2])]
            if len(parts) % 2:
                nxt.append(parts[-1])
            parts = nxt
        return parts[0]

    def kernel(disp_ref, gt_ref, out_ref):
        c = pl.program_id(0)      # shard (parallel axis)
        i = pl.program_id(1)      # tile within shard (reduction axis)

        @pl.when(i == 0)
        def _init():
            out_ref[...] = jnp.zeros_like(out_ref)

        def accumulate(n_valid):
            # n_valid: None for a statically fully-valid tile (no row mask at
            # all), otherwise a traced scalar row limit for this tile.
            accs = [jnp.zeros((SUBLANE, LANE), jnp.float32) for _ in range(n_scales + 1)]
            for ci in range(n_chunks):                 # static unroll; chunk temps stay vreg-resident
                r0 = ci * CHUNK_ROWS
                gt = gt_ref[r0:r0 + CHUNK_ROWS, :]
                mask = (gt > 0.0) & (gt < 192.0)
                if n_valid is not None:
                    row = jax.lax.broadcasted_iota(jnp.int32, (CHUNK_ROWS, LANE), 0)
                    mask = mask & ((row + r0) < n_valid)
                # mask count -> channel n_scales
                accs[n_scales] = accs[n_scales] + fold(jnp.where(mask, 1.0, 0.0))
                for k in range(n_scales):              # static unroll over prediction scales
                    # Fold the mask into the diff with a select: masked-out (or
                    # garbage-tail) elements become exactly 0 and contribute 0
                    # after SmoothL1, so no post-select is needed.
                    d = jnp.where(mask, disp_ref[k, r0:r0 + CHUNK_ROWS, :] - gt, 0.0)
                    ad = jnp.abs(d)
                    # SmoothL1 (beta = 1.0, PyTorch default)
                    elt = jnp.where(ad < 1.0, 0.5 * d * d, ad - 0.5)
                    accs[k] = accs[k] + fold(elt)
            for k in range(n_scales + 1):
                out_ref[0, k] += accs[k]

        if need_row_mask:
            t = c * tiles_per_shard + i                # unclamped global tile index
            n_valid = valid_rows - t * block_rows      # rows of real data in this tile

            @pl.when(n_valid >= block_rows)            # common case: no row mask at all
            def _full():
                accumulate(None)

            @pl.when((n_valid > 0) & (n_valid < block_rows))   # ragged straddling tile
            def _ragged():
                accumulate(n_valid)
            # n_valid <= 0 (fully out-of-range / clamped duplicate tile): skip everything.
        else:
            accumulate(None)

    return kernel


@functools.partial(jax.jit, static_argnames=("train",))
def gwcnet_loss(disparity, ground_truth, train=True):
    """disparity: (4, B, H, W) float32; ground_truth: (B, H, W) float32.

    Returns NaN if no pixel satisfies 0 < gt < 192 (same as the PyTorch module).
    """
    disp = jnp.asarray(disparity, jnp.float32)
    gt = jnp.asarray(ground_truth, jnp.float32)

    n = gt.size
    pad = (-n) % LANE
    gt_flat = gt.reshape(-1)
    disp_flat = disp.reshape(4, -1)
    if pad:
        # Full-copy pad only when the flat size is not 128-aligned (rare for
        # real image shapes).  Padded gt == 0 is excluded by the gt > 0 mask.
        gt_flat = jnp.pad(gt_flat, (0, pad))
        disp_flat = jnp.pad(disp_flat, ((0, 0), (0, pad)))

    rows = (n + pad) // LANE
    gt_2d = gt_flat.reshape(rows, LANE)                 # free view when no pad
    disp_3d = disp_flat.reshape(4, rows, LANE)

    # ---- blocking / sharding ------------------------------------------------
    num_shards = NUM_SHARDS if rows >= NUM_SHARDS * CHUNK_ROWS else 1
    tiles_per_shard = max(1, _cdiv(_cdiv(rows, MAX_BLOCK_ROWS), num_shards))
    q = num_shards * tiles_per_shard
    # Size blocks so the grid covers `rows` almost exactly (<= CHUNK_ROWS-1 rows
    # of overshoot per tile): no duplicate-tile HBM reads from the shard split.
    block_rows = min(MAX_BLOCK_ROWS, _round_up(_cdiv(rows, q), CHUNK_ROWS))
    covered = q * block_rows
    need_row_mask = covered != rows
    last_tile = max(0, _cdiv(rows, block_rows) - 1)
    needs_clamp = (q - 1) > last_tile                   # only if a tile starts past the data

    if train:
        n_scales, k_first, k_block = 4, 0, 4            # all four predictions
    else:
        n_scales, k_first, k_block = 1, 3, 1            # only the disp3 slab is streamed
    n_out = n_scales + 1                                # per-scale sums + mask count

    def tile_index(c, i):
        t = c * tiles_per_shard + i
        if needs_clamp:
            t = jnp.minimum(t, last_tile)               # safety net; compute is skipped in-kernel
        return t

    kernel = _make_kernel(n_scales, block_rows, tiles_per_shard, rows, need_row_mask)

    partials = pl.pallas_call(
        kernel,
        out_shape=jax.ShapeDtypeStruct((num_shards, n_out, SUBLANE, LANE), jnp.float32),
        grid_spec=pltpu.PrefetchScalarGridSpec(
            num_scalar_prefetch=0,
            grid=(num_shards, tiles_per_shard),
            in_specs=[
                pl.BlockSpec((k_block, block_rows, LANE),
                             lambda c, i: (k_first, tile_index(c, i), 0)),
                pl.BlockSpec((block_rows, LANE),
                             lambda c, i: (tile_index(c, i), 0)),
            ],
            out_specs=pl.BlockSpec((1, n_out, SUBLANE, LANE),
                                   lambda c, i: (c, 0, 0, 0)),
        ),
        compiler_params=pltpu.CompilerParams(
            dimension_semantics=("parallel", "arbitrary"),
        ),
    )(disp_3d, gt_2d)

    sums = jnp.sum(partials, axis=(0, 2, 3))            # (n_out,) tiny final reduce
    count = sums[n_scales]
    losses = sums[:n_scales] / count                    # NaN if mask empty (matches PyTorch)

    if train:
        return 0.5 * losses[0] + 0.5 * losses[1] + 0.7 * losses[2] + losses[3]
    return losses[0]


# ----------------------------- reference & tests ------------------------------

def _reference_loss(disparity, ground_truth, train=True):
    gt = jnp.asarray(ground_truth, jnp.float32)
    mask = (gt > 0.0) & (gt < 192.0)
    cnt = jnp.sum(mask.astype(jnp.float32))

    def sl1_mean(pred):
        x = pred - gt
        ax = jnp.abs(x)
        e = jnp.where(ax < 1.0, 0.5 * x * x, ax - 0.5)
        return jnp.sum(jnp.where(mask, e, 0.0)) / cnt

    losses = [sl1_mean(jnp.asarray(disparity[k], jnp.float32)) for k in range(4)]
    if train:
        return 0.5 * losses[0] + 0.5 * losses[1] + 0.7 * losses[2] + losses[3]
    return losses[3]


def _check(shape, key):
    k1, k2 = jax.random.split(key)
    ground_truth = jax.random.uniform(k1, shape, jnp.float32, 0.0, 250.0)
    disparity = ground_truth[None] + jax.random.normal(k2, (4,) + shape, jnp.float32) * 3.0

    out = jax.block_until_ready(gwcnet_loss(disparity, ground_truth, train=True))
    ref = _reference_loss(disparity, ground_truth, train=True)
    assert jnp.allclose(out, ref, rtol=1e-4, atol=1e-5), (shape, out, ref)

    out_eval = jax.block_until_ready(gwcnet_loss(disparity, ground_truth, train=False))
    ref_eval = _reference_loss(disparity, ground_truth, train=False)
    assert jnp.allclose(out_eval, ref_eval, rtol=1e-4, atol=1e-5), (shape, out_eval, ref_eval)


if __name__ == "__main__":
    key = jax.random.PRNGKey(0)
    keys = jax.random.split(key, 4)

    _check((2, 16, 16), keys[0])    # tiny single tile, exact lane fit, ragged sublane rows
    _check((2, 15, 17), keys[1])    # lane-pad path + ragged rows
    _check((2, 96, 168), keys[2])   # 2-shard split; fast-path and ragged tiles (gated row mask)
    _check((2, 256, 512), keys[3])  # full 1024-row blocks on both shards, no row mask

    print("KERNEL_OK")
</pallas_src>

<mosaic_0001>
module attributes {stable_mosaic.version = 11 : i64} {
  func.func @kernel(%arg0: i32, %arg1: i32, %arg2: memref<4x32x128xf32, #tpu.memory_space<vmem>>, %arg3: memref<32x128xf32, #tpu.memory_space<vmem>>, %arg4: memref<1x5x8x128xf32, #tpu.memory_space<vmem>>) attributes {dimension_semantics = [#tpu.dimension_semantics<parallel>, #tpu.dimension_semantics<arbitrary>], iteration_bounds = array<i64: 1, 1>, scalar_prefetch = 0 : i64, scratch_operands = 0 : i64, tpu.core_type = #tpu.core_type<tc>, window_params = [{transform_indices = @transform_0, window_bounds = array<i64: 4, 32, 128>}, {transform_indices = @transform_1, window_bounds = array<i64: 32, 128>}, {transform_indices = @transform_2, window_bounds = array<i64: 1, 5, 8, 128>}]} {
    %c0_i32 = arith.constant 0 : i32
    %0 = arith.cmpi eq, %arg1, %c0_i32 : i32
    %1 = arith.extui %0 : i1 to i32
    %c0_i32_0 = arith.constant 0 : i32
    %2 = arith.cmpi ne, %1, %c0_i32_0 : i32
    scf.if %2 {
      %cst = arith.constant 0.000000e+00 : f32
      %15 = vector.broadcast %cst : f32 to vector<1x5x8x128xf32>
      %c0 = arith.constant 0 : index
      %c0_6 = arith.constant 0 : index
      %c0_7 = arith.constant 0 : index
      %c0_8 = arith.constant 0 : index
      %16 = vector.load %arg4[%c0, %c0_6, %c0_7, %c0_8] : memref<1x5x8x128xf32, #tpu.memory_space<vmem>>, vector<1x5x8x128xf32>
      tpu.vector_store %arg4[%c0, %c0_6, %c0_7, %c0_8], %15 {strides = array<i32>} : memref<1x5x8x128xf32, #tpu.memory_space<vmem>>, vector<1x5x8x128xf32>,
    } else {
    }
    %c1_i32 = arith.constant 1 : i32
    %3 = arith.muli %arg0, %c1_i32 : i32
    %4 = arith.addi %3, %arg1 : i32
    %c32_i32 = arith.constant 32 : i32
    %5 = arith.muli %4, %c32_i32 : i32
    %c4_i32 = arith.constant 4 : i32
    %6 = arith.subi %c4_i32, %5 : i32
    %c32_i32_1 = arith.constant 32 : i32
    %7 = arith.cmpi sge, %6, %c32_i32_1 : i32
    %8 = arith.extui %7 : i1 to i32
    %c0_i32_2 = arith.constant 0 : i32
    %9 = arith.cmpi ne, %8, %c0_i32_2 : i32
    scf.if %9 {
      %cst = arith.constant 0.000000e+00 : f32
      %15 = vector.broadcast %cst : f32 to vector<8x128xf32>
      %cst_6 = arith.constant 0.000000e+00 : f32
      %16 = vector.broadcast %cst_6 : f32 to vector<8x128xf32>
      %cst_7 = arith.constant 0.000000e+00 : f32
      %17 = vector.broadcast %cst_7 : f32 to vector<8x128xf32>
      %cst_8 = arith.constant 0.000000e+00 : f32
      %18 = vector.broadcast %cst_8 : f32 to vector<8x128xf32>
      %cst_9 = arith.constant 0.000000e+00 : f32
      %19 = vector.broadcast %cst_9 : f32 to vector<8x128xf32>
      %c0 = arith.constant 0 : index
      %c0_10 = arith.constant 0 : index
      %20 = vector.load %arg3[%c0, %c0_10] : memref<32x128xf32, #tpu.memory_space<vmem>>, vector<32x128xf32>
      %cst_11 = arith.constant 0.000000e+00 : f32
      %21 = vector.broadcast %cst_11 : f32 to vector<32x128xf32>
      %22 = arith.cmpf ogt, %20, %21 : vector<32x128xf32>
      %cst_12 = arith.constant 1.920000e+02 : f32
      %23 = vector.broadcast %cst_12 : f32 to vector<32x128xf32>
      %24 = arith.cmpf olt, %20, %23 : vector<32x128xf32>
      %25 = arith.andi %22, %24 : vector<32x128xi1>
      %cst_13 = arith.constant 1.000000e+00 : f32
      %cst_14 = arith.constant 0.000000e+00 : f32
      %26 = vector.broadcast %cst_13 : f32 to vector<32x128xf32>
      %27 = vector.broadcast %cst_14 : f32 to vector<32x128xf32>
      %28 = arith.select %25, %26, %27 : vector<32x128xi1>, vector<32x128xf32>
      %29 = vector.extract_strided_slice %28 {offsets = [0, 0], sizes = [8, 128], strides = [1, 1]} : vector<32x128xf32> to vector<8x128xf32>
      %30 = vector.extract_strided_slice %28 {offsets = [8, 0], sizes = [8, 128], strides = [1, 1]} : vector<32x128xf32> to vector<8x128xf32>
      %31 = vector.extract_strided_slice %28 {offsets = [16, 0], sizes = [8, 128], strides = [1, 1]} : vector<32x128xf32> to vector<8x128xf32>
      %32 = vector.extract_strided_slice %28 {offsets = [24, 0], sizes = [8, 128], strides = [1, 1]} : vector<32x128xf32> to vector<8x128xf32>
      %33 = arith.addf %29, %30 : vector<8x128xf32>
      %34 = arith.addf %31, %32 : vector<8x128xf32>
      %35 = arith.addf %33, %34 : vector<8x128xf32>
      %36 = arith.addf %19, %35 : vector<8x128xf32>
      %c0_15 = arith.constant 0 : index
      %c0_16 = arith.constant 0 : index
      %c0_17 = arith.constant 0 : index
      %37 = vector.load %arg2[%c0_15, %c0_16, %c0_17] : memref<4x32x128xf32, #tpu.memory_space<vmem>>, vector<1x32x128xf32>
      %38 = vector.shape_cast %37 : vector<1x32x128xf32> to vector<32x128xf32>
      %39 = arith.subf %38, %20 : vector<32x128xf32>
      %cst_18 = arith.constant 0.000000e+00 : f32
      %40 = vector.broadcast %cst_18 : f32 to vector<32x128xf32>
      %41 = arith.select %25, %39, %40 : vector<32x128xi1>, vector<32x128xf32>
      %42 = math.absf %41 : vector<32x128xf32>
      %cst_19 = arith.constant 1.000000e+00 : f32
      %43 = vector.broadcast %cst_19 : f32 to vector<32x128xf32>
      %44 = arith.cmpf olt, %42, %43 : vector<32x128xf32>
      %cst_20 = arith.constant 5.000000e-01 : f32
      %45 = vector.broadcast %cst_20 : f32 to vector<32x128xf32>
      %46 = arith.mulf %45, %41 : vector<32x128xf32>
      %47 = arith.mulf %46, %41 : vector<32x128xf32>
      %cst_21 = arith.constant 5.000000e-01 : f32
      %48 = vector.broadcast %cst_21 : f32 to vector<32x128xf32>
      %49 = arith.subf %42, %48 : vector<32x128xf32>
      %50 = arith.select %44, %47, %49 : vector<32x128xi1>, vector<32x128xf32>
      %51 = vector.extract_strided_slice %50 {offsets = [0, 0], sizes = [8, 128], strides = [1, 1]} : vector<32x128xf32> to vector<8x128xf32>
      %52 = vector.extract_strided_slice %50 {offsets = [8, 0], sizes = [8, 128], strides = [1, 1]} : vector<32x128xf32> to vector<8x128xf32>
      %53 = vector.extract_strided_slice %50 {offsets = [16, 0], sizes = [8, 128], strides = [1, 1]} : vector<32x128xf32> to vector<8x128xf32>
      %54 = vector.extract_strided_slice %50 {offsets = [24, 0], sizes = [8, 128], strides = [1, 1]} : vector<32x128xf32> to vector<8x128xf32>
      %55 = arith.addf %51, %52 : vector<8x128xf32>
      %56 = arith.addf %53, %54 : vector<8x128xf32>
      %57 = arith.addf %55, %56 : vector<8x128xf32>
      %58 = arith.addf %15, %57 : vector<8x128xf32>
      %c1 = arith.constant 1 : index
      %c0_22 = arith.constant 0 : index
      %c0_23 = arith.constant 0 : index
      %59 = vector.load %arg2[%c1, %c0_22, %c0_23] : memref<4x32x128xf32, #tpu.memory_space<vmem>>, vector<1x32x128xf32>
      %60 = vector.shape_cast %59 : vector<1x32x128xf32> to vector<32x128xf32>
      %61 = arith.subf %60, %20 : vector<32x128xf32>
      %cst_24 = arith.constant 0.000000e+00 : f32
      %62 = vector.broadcast %cst_24 : f32 to vector<32x128xf32>
      %63 = arith.select %25, %61, %62 : vector<32x128xi1>, vector<32x128xf32>
      %64 = math.absf %63 : vector<32x128xf32>
      %cst_25 = arith.constant 1.000000e+00 : f32
      %65 = vector.broadcast %cst_25 : f32 to vector<32x128xf32>
      %66 = arith.cmpf olt, %64, %65 : vector<32x128xf32>
      %cst_26 = arith.constant 5.000000e-01 : f32
      %67 = vector.broadcast %cst_26 : f32 to vector<32x128xf32>
      %68 = arith.mulf %67, %63 : vector<32x128xf32>
      %69 = arith.mulf %68, %63 : vector<32x128xf32>
      %cst_27 = arith.constant 5.000000e-01 : f32
      %70 = vector.broadcast %cst_27 : f32 to vector<32x128xf32>
      %71 = arith.subf %64, %70 : vector<32x128xf32>
      %72 = arith.select %66, %69, %71 : vector<32x128xi1>, vector<32x128xf32>
      %73 = vector.extract_strided_slice %72 {offsets = [0, 0], sizes = [8, 128], strides = [1, 1]} : vector<32x128xf32> to vector<8x128xf32>
      %74 = vector.extract_strided_slice %72 {offsets = [8, 0], sizes = [8, 128], strides = [1, 1]} : vector<32x128xf32> to vector<8x128xf32>
      %75 = vector.extract_strided_slice %72 {offsets = [16, 0], sizes = [8, 128], strides = [1, 1]} : vector<32x128xf32> to vector<8x128xf32>
      %76 = vector.extract_strided_slice %72 {offsets = [24, 0], sizes = [8, 128], strides = [1, 1]} : vector<32x128xf32> to vector<8x128xf32>
      %77 = arith.addf %73, %74 : vector<8x128xf32>
      %78 = arith.addf %75, %76 : vector<8x128xf32>
      %79 = arith.addf %77, %78 : vector<8x128xf32>
      %80 = arith.addf %16, %79 : vector<8x128xf32>
      %c2 = arith.constant 2 : index
      %c0_28 = arith.constant 0 : index
      %c0_29 = arith.constant 0 : index
      %81 = vector.load %arg2[%c2, %c0_28, %c0_29] : memref<4x32x128xf32, #tpu.memory_space<vmem>>, vector<1x32x128xf32>
      %82 = vector.shape_cast %81 : vector<1x32x128xf32> to vector<32x128xf32>
      %83 = arith.subf %82, %20 : vector<32x128xf32>
      %cst_30 = arith.constant 0.000000e+00 : f32
      %84 = vector.broadcast %cst_30 : f32 to vector<32x128xf32>
      %85 = arith.select %25, %83, %84 : vector<32x128xi1>, vector<32x128xf32>
      %86 = math.absf %85 : vector<32x128xf32>
      %cst_31 = arith.constant 1.000000e+00 : f32
      %87 = vector.broadcast %cst_31 : f32 to vector<32x128xf32>
      %88 = arith.cmpf olt, %86, %87 : vector<32x128xf32>
      %cst_32 = arith.constant 5.000000e-01 : f32
      %89 = vector.broadcast %cst_32 : f32 to vector<32x128xf32>
      %90 = arith.mulf %89, %85 : vector<32x128xf32>
      %91 = arith.mulf %90, %85 : vector<32x128xf32>
      %cst_33 = arith.constant 5.000000e-01 : f32
      %92 = vector.broadcast %cst_33 : f32 to vector<32x128xf32>
      %93 = arith.subf %86, %92 : vector<32x128xf32>
      %94 = arith.select %88, %91, %93 : vector<32x128xi1>, vector<32x128xf32>
      %95 = vector.extract_strided_slice %94 {offsets = [0, 0], sizes = [8, 128], strides = [1, 1]} : vector<32x128xf32> to vector<8x128xf32>
      %96 = vector.extract_strided_slice %94 {offsets = [8, 0], sizes = [8, 128], strides = [1, 1]} : vector<32x128xf32> to vector<8x128xf32>
      %97 = vector.extract_strided_slice %94 {offsets = [16, 0], sizes = [8, 128], strides = [1, 1]} : vector<32x128xf32> to vector<8x128xf32>
      %98 = vector.extract_strided_slice %94 {offsets = [24, 0], sizes = [8, 128], strides = [1, 1]} : vector<32x128xf32> to vector<8x128xf32>
      %99 = arith.addf %95, %96 : vector<8x128xf32>
      %100 = arith.addf %97, %98 : vector<8x128xf32>
      %101 = arith.addf %99, %100 : vector<8x128xf32>
      %102 = arith.addf %17, %101 : vector<8x128xf32>
      %c3 = arith.constant 3 : index
      %c0_34 = arith.constant 0 : index
      %c0_35 = arith.constant 0 : index
      %103 = vector.load %arg2[%c3, %c0_34, %c0_35] : memref<4x32x128xf32, #tpu.memory_space<vmem>>, vector<1x32x128xf32>
      %104 = vector.shape_cast %103 : vector<1x32x128xf32> to vector<32x128xf32>
      %105 = arith.subf %104, %20 : vector<32x128xf32>
      %cst_36 = arith.constant 0.000000e+00 : f32
      %106 = vector.broadcast %cst_36 : f32 to vector<32x128xf32>
      %107 = arith.select %25, %105, %106 : vector<32x128xi1>, vector<32x128xf32>
      %108 = math.absf %107 : vector<32x128xf32>
      %cst_37 = arith.constant 1.000000e+00 : f32
      %109 = vector.broadcast %cst_37 : f32 to vector<32x128xf32>
      %110 = arith.cmpf olt, %108, %109 : vector<32x128xf32>
      %cst_38 = arith.constant 5.000000e-01 : f32
      %111 = vector.broadcast %cst_38 : f32 to vector<32x128xf32>
      %112 = arith.mulf %111, %107 : vector<32x128xf32>
      %113 = arith.mulf %112, %107 : vector<32x128xf32>
      %cst_39 = arith.constant 5.000000e-01 : f32
      %114 = vector.broadcast %cst_39 : f32 to vector<32x128xf32>
      %115 = arith.subf %108, %114 : vector<32x128xf32>
      %116 = arith.select %110, %113, %115 : vector<32x128xi1>, vector<32x128xf32>
      %117 = vector.extract_strided_slice %116 {offsets = [0, 0], sizes = [8, 128], strides = [1, 1]} : vector<32x128xf32> to vector<8x128xf32>
      %118 = vector.extract_strided_slice %116 {offsets = [8, 0], sizes = [8, 128], strides = [1, 1]} : vector<32x128xf32> to vector<8x128xf32>
      %119 = vector.extract_strided_slice %116 {offsets = [16, 0], sizes = [8, 128], strides = [1, 1]} : vector<32x128xf32> to vector<8x128xf32>
      %120 = vector.extract_strided_slice %116 {offsets = [24, 0], sizes = [8, 128], strides = [1, 1]} : vector<32x128xf32> to vector<8x128xf32>
      %121 = arith.addf %117, %118 : vector<8x128xf32>
      %122 = arith.addf %119, %120 : vector<8x128xf32>
      %123 = arith.addf %121, %122 : vector<8x128xf32>
      %124 = arith.addf %18, %123 : vector<8x128xf32>
      %c0_40 = arith.constant 0 : index
      %c0_41 = arith.constant 0 : index
      %c0_42 = arith.constant 0 : index
      %c0_43 = arith.constant 0 : index
      %125 = vector.load %arg4[%c0_40, %c0_41, %c0_42, %c0_43] : memref<1x5x8x128xf32, #tpu.memory_space<vmem>>, vector<1x1x8x128xf32>
      %126 = vector.shape_cast %125 : vector<1x1x8x128xf32> to vector<8x128xf32>
      %127 = arith.addf %126, %58 : vector<8x128xf32>
      %c0_44 = arith.constant 0 : index
      %c0_45 = arith.constant 0 : index
      %c0_46 = arith.constant 0 : index
      %c0_47 = arith.constant 0 : index
      %128 = vector.load %arg4[%c0_44, %c0_45, %c0_46, %c0_47] : memref<1x5x8x128xf32, #tpu.memory_space<vmem>>, vector<1x1x8x128xf32>
      %129 = vector.shape_cast %128 : vector<1x1x8x128xf32> to vector<8x128xf32>
      %130 = vector.shape_cast %127 : vector<8x128xf32> to vector<1x1x8x128xf32>
      tpu.vector_store %arg4[%c0_44, %c0_45, %c0_46, %c0_47], %130 {strides = array<i32>} : memref<1x5x8x128xf32, #tpu.memory_space<vmem>>, vector<1x1x8x128xf32>,
      %c0_48 = arith.constant 0 : index
      %c1_49 = arith.constant 1 : index
      %c0_50 = arith.constant 0 : index
      %c0_51 = arith.constant 0 : index
      %131 = vector.load %arg4[%c0_48, %c1_49, %c0_50, %c0_51] : memref<1x5x8x128xf32, #tpu.memory_space<vmem>>, vector<1x1x8x128xf32>
      %132 = vector.shape_cast %131 : vector<1x1x8x128xf32> to vector<8x128xf32>
      %133 = arith.addf %132, %80 : vector<8x128xf32>
      %c0_52 = arith.constant 0 : index
      %c1_53 = arith.constant 1 : index
      %c0_54 = arith.constant 0 : index
      %c0_55 = arith.constant 0 : index
      %134 = vector.load %arg4[%c0_52, %c1_53, %c0_54, %c0_55] : memref<1x5x8x128xf32, #tpu.memory_space<vmem>>, vector<1x1x8x128xf32>
      %135 = vector.shape_cast %134 : vector<1x1x8x128xf32> to vector<8x128xf32>
      %136 = vector.shape_cast %133 : vector<8x128xf32> to vector<1x1x8x128xf32>
      tpu.vector_store %arg4[%c0_52, %c1_53, %c0_54, %c0_55], %136 {strides = array<i32>} : memref<1x5x8x128xf32, #tpu.memory_space<vmem>>, vector<1x1x8x128xf32>,
      %c0_56 = arith.constant 0 : index
      %c2_57 = arith.constant 2 : index
      %c0_58 = arith.constant 0 : index
      %c0_59 = arith.constant 0 : index
      %137 = vector.load %arg4[%c0_56, %c2_57, %c0_58, %c0_59] : memref<1x5x8x128xf32, #tpu.memory_space<vmem>>, vector<1x1x8x128xf32>
      %138 = vector.shape_cast %137 : vector<1x1x8x128xf32> to vector<8x128xf32>
      %139 = arith.addf %138, %102 : vector<8x128xf32>
      %c0_60 = arith.constant 0 : index
      %c2_61 = arith.constant 2 : index
      %c0_62 = arith.constant 0 : index
      %c0_63 = arith.constant 0 : index
      %140 = vector.load %arg4[%c0_60, %c2_61, %c0_62, %c0_63] : memref<1x5x8x128xf32, #tpu.memory_space<vmem>>, vector<1x1x8x128xf32>
      %141 = vector.shape_cast %140 : vector<1x1x8x128xf32> to vector<8x128xf32>
      %142 = vector.shape_cast %139 : vector<8x128xf32> to vector<1x1x8x128xf32>
      tpu.vector_store %arg4[%c0_60, %c2_61, %c0_62, %c0_63], %142 {strides = array<i32>} : memref<1x5x8x128xf32, #tpu.memory_space<vmem>>, vector<1x1x8x128xf32>,
      %c0_64 = arith.constant 0 : index
      %c3_65 = arith.constant 3 : index
      %c0_66 = arith.constant 0 : index
      %c0_67 = arith.constant 0 : index
      %143 = vector.load %arg4[%c0_64, %c3_65, %c0_66, %c0_67] : memref<1x5x8x128xf32, #tpu.memory_space<vmem>>, vector<1x1x8x128xf32>
      %144 = vector.shape_cast %143 : vector<1x1x8x128xf32> to vector<8x128xf32>
      %145 = arith.addf %144, %124 : vector<8x128xf32>
      %c0_68 = arith.constant 0 : index
      %c3_69 = arith.constant 3 : index
      %c0_70 = arith.constant 0 : index
      %c0_71 = arith.constant 0 : index
      %146 = vector.load %arg4[%c0_68, %c3_69, %c0_70, %c0_71] : memref<1x5x8x128xf32, #tpu.memory_space<vmem>>, vector<1x1x8x128xf32>
      %147 = vector.shape_cast %146 : vector<1x1x8x128xf32> to vector<8x128xf32>
      %148 = vector.shape_cast %145 : vector<8x128xf32> to vector<1x1x8x128xf32>
      tpu.vector_store %arg4[%c0_68, %c3_69, %c0_70, %c0_71], %148 {strides = array<i32>} : memref<1x5x8x128xf32, #tpu.memory_space<vmem>>, vector<1x1x8x128xf32>,
      %c0_72 = arith.constant 0 : index
      %c4 = arith.constant 4 : index
      %c0_73 = arith.constant 0 : index
      %c0_74 = arith.constant 0 : index
      %149 = vector.load %arg4[%c0_72, %c4, %c0_73, %c0_74] : memref<1x5x8x128xf32, #tpu.memory_space<vmem>>, vector<1x1x8x128xf32>
      %150 = vector.shape_cast %149 : vector<1x1x8x128xf32> to vector<8x128xf32>
      %151 = arith.addf %150, %36 : vector<8x128xf32>
      %c0_75 = arith.constant 0 : index
      %c4_76 = arith.constant 4 : index
      %c0_77 = arith.constant 0 : index
      %c0_78 = arith.constant 0 : index
      %152 = vector.load %arg4[%c0_75, %c4_76, %c0_77, %c0_78] : memref<1x5x8x128xf32, #tpu.memory_space<vmem>>, vector<1x1x8x128xf32>
      %153 = vector.shape_cast %152 : vector<1x1x8x128xf32> to vector<8x128xf32>
      %154 = vector.shape_cast %151 : vector<8x128xf32> to vector<1x1x8x128xf32>
      tpu.vector_store %arg4[%c0_75, %c4_76, %c0_77, %c0_78], %154 {strides = array<i32>} : memref<1x5x8x128xf32, #tpu.memory_space<vmem>>, vector<1x1x8x128xf32>,
    } else {
    }
    %c0_i32_3 = arith.constant 0 : i32
    %10 = arith.cmpi sgt, %6, %c0_i32_3 : i32
    %c32_i32_4 = arith.constant 32 : i32
    %11 = arith.cmpi slt, %6, %c32_i32_4 : i32
    %12 = arith.andi %10, %11 : i1
    %13 = arith.extui %12 : i1 to i32
    %c0_i32_5 = arith.constant 0 : i32
    %14 = arith.cmpi ne, %13, %c0_i32_5 : i32
    scf.if %14 {
      %cst = arith.constant 0.000000e+00 : f32
      %15 = vector.broadcast %cst : f32 to vector<8x128xf32>
      %cst_6 = arith.constant 0.000000e+00 : f32
      %16 = vector.broadcast %cst_6 : f32 to vector<8x128xf32>
      %cst_7 = arith.constant 0.000000e+00 : f32
      %17 = vector.broadcast %cst_7 : f32 to vector<8x128xf32>
      %cst_8 = arith.constant 0.000000e+00 : f32
      %18 = vector.broadcast %cst_8 : f32 to vector<8x128xf32>
      %cst_9 = arith.constant 0.000000e+00 : f32
      %19 = vector.broadcast %cst_9 : f32 to vector<8x128xf32>
      %c0 = arith.constant 0 : index
      %c0_10 = arith.constant 0 : index
      %20 = vector.load %arg3[%c0, %c0_10] : memref<32x128xf32, #tpu.memory_space<vmem>>, vector<32x128xf32>
      %cst_11 = arith.constant 0.000000e+00 : f32
      %21 = vector.broadcast %cst_11 : f32 to vector<32x128xf32>
      %22 = arith.cmpf ogt, %20, %21 : vector<32x128xf32>
      %cst_12 = arith.constant 1.920000e+02 : f32
      %23 = vector.broadcast %cst_12 : f32 to vector<32x128xf32>
      %24 = arith.cmpf olt, %20, %23 : vector<32x128xf32>
      %25 = arith.andi %22, %24 : vector<32x128xi1>
      %26 = tpu.iota {dimensions = array<i32: 0>} : vector<32x128xi32>
      %c0_i32_13 = arith.constant 0 : i32
      %27 = vector.broadcast %c0_i32_13 : i32 to vector<32x128xi32>
      %28 = arith.addi %26, %27 : vector<32x128xi32>
      %29 = vector.broadcast %6 : i32 to vector<32x128xi32>
      %30 = arith.cmpi slt, %28, %29 : vector<32x128xi32>
      %31 = arith.andi %25, %30 : vector<32x128xi1>
      %cst_14 = arith.constant 1.000000e+00 : f32
      %cst_15 = arith.constant 0.000000e+00 : f32
      %32 = vector.broadcast %cst_14 : f32 to vector<32x128xf32>
      %33 = vector.broadcast %cst_15 : f32 to vector<32x128xf32>
      %34 = arith.select %31, %32, %33 : vector<32x128xi1>, vector<32x128xf32>
      %35 = vector.extract_strided_slice %34 {offsets = [0, 0], sizes = [8, 128], strides = [1, 1]} : vector<32x128xf32> to vector<8x128xf32>
      %36 = vector.extract_strided_slice %34 {offsets = [8, 0], sizes = [8, 128], strides = [1, 1]} : vector<32x128xf32> to vector<8x128xf32>
      %37 = vector.extract_strided_slice %34 {offsets = [16, 0], sizes = [8, 128], strides = [1, 1]} : vector<32x128xf32> to vector<8x128xf32>
      %38 = vector.extract_strided_slice %34 {offsets = [24, 0], sizes = [8, 128], strides = [1, 1]} : vector<32x128xf32> to vector<8x128xf32>
      %39 = arith.addf %35, %36 : vector<8x128xf32>
      %40 = arith.addf %37, %38 : vector<8x128xf32>
      %41 = arith.addf %39, %40 : vector<8x128xf32>
      %42 = arith.addf %19, %41 : vector<8x128xf32>
      %c0_16 = arith.constant 0 : index
      %c0_17 = arith.constant 0 : index
      %c0_18 = arith.constant 0 : index
      %43 = vector.load %arg2[%c0_16, %c0_17, %c0_18] : memref<4x32x128xf32, #tpu.memory_space<vmem>>, vector<1x32x128xf32>
      %44 = vector.shape_cast %43 : vector<1x32x128xf32> to vector<32x128xf32>
      %45 = arith.subf %44, %20 : vector<32x128xf32>
      %cst_19 = arith.constant 0.000000e+00 : f32
      %46 = vector.broadcast %cst_19 : f32 to vector<32x128xf32>
      %47 = arith.select %31, %45, %46 : vector<32x128xi1>, vector<32x128xf32>
      %48 = math.absf %47 : vector<32x128xf32>
      %cst_20 = arith.constant 1.000000e+00 : f32
      %49 = vector.broadcast %cst_20 : f32 to vector<32x128xf32>
      %50 = arith.cmpf olt, %48, %49 : vector<32x128xf32>
      %cst_21 = arith.constant 5.000000e-01 : f32
      %51 = vector.broadcast %cst_21 : f32 to vector<32x128xf32>
      %52 = arith.mulf %51, %47 : vector<32x128xf32>
      %53 = arith.mulf %52, %47 : vector<32x128xf32>
      %cst_22 = arith.constant 5.000000e-01 : f32
      %54 = vector.broadcast %cst_22 : f32 to vector<32x128xf32>
      %55 = arith.subf %48, %54 : vector<32x128xf32>
      %56 = arith.select %50, %53, %55 : vector<32x128xi1>, vector<32x128xf32>
      %57 = vector.extract_strided_slice %56 {offsets = [0, 0], sizes = [8, 128], strides = [1, 1]} : vector<32x128xf32> to vector<8x128xf32>
      %58 = vector.extract_strided_slice %56 {offsets = [8, 0], sizes = [8, 128], strides = [1, 1]} : vector<32x128xf32> to vector<8x128xf32>
      %59 = vector.extract_strided_slice %56 {offsets = [16, 0], sizes = [8, 128], strides = [1, 1]} : vector<32x128xf32> to vector<8x128xf32>
      %60 = vector.extract_strided_slice %56 {offsets = [24, 0], sizes = [8, 128], strides = [1, 1]} : vector<32x128xf32> to vector<8x128xf32>
      %61 = arith.addf %57, %58 : vector<8x128xf32>
      %62 = arith.addf %59, %60 : vector<8x128xf32>
      %63 = arith.addf %61, %62 : vector<8x128xf32>
      %64 = arith.addf %15, %63 : vector<8x128xf32>
      %c1 = arith.constant 1 : index
      %c0_23 = arith.constant 0 : index
      %c0_24 = arith.constant 0 : index
      %65 = vector.load %arg2[%c1, %c0_23, %c0_24] : memref<4x32x128xf32, #tpu.memory_space<vmem>>, vector<1x32x128xf32>
      %66 = vector.shape_cast %65 : vector<1x32x128xf32> to vector<32x128xf32>
      %67 = arith.subf %66, %20 : vector<32x128xf32>
      %cst_25 = arith.constant 0.000000e+00 : f32
      %68 = vector.broadcast %cst_25 : f32 to vector<32x128xf32>
      %69 = arith.select %31, %67, %68 : vector<32x128xi1>, vector<32x128xf32>
      %70 = math.absf %69 : vector<32x128xf32>
      %cst_26 = arith.constant 1.000000e+00 : f32
      %71 = vector.broadcast %cst_26 : f32 to vector<32x128xf32>
      %72 = arith.cmpf olt, %70, %71 : vector<32x128xf32>
      %cst_27 = arith.constant 5.000000e-01 : f32
      %73 = vector.broadcast %cst_27 : f32 to vector<32x128xf32>
      %74 = arith.mulf %73, %69 : vector<32x128xf32>
      %75 = arith.mulf %74, %69 : vector<32x128xf32>
      %cst_28 = arith.constant 5.000000e-01 : f32
      %76 = vector.broadcast %cst_28 : f32 to vector<32x128xf32>
      %77 = arith.subf %70, %76 : vector<32x128xf32>
      %78 = arith.select %72, %75, %77 : vector<32x128xi1>, vector<32x128xf32>
      %79 = vector.extract_strided_slice %78 {offsets = [0, 0], sizes = [8, 128], strides = [1, 1]} : vector<32x128xf32> to vector<8x128xf32>
      %80 = vector.extract_strided_slice %78 {offsets = [8, 0], sizes = [8, 128], strides = [1, 1]} : vector<32x128xf32> to vector<8x128xf32>
      %81 = vector.extract_strided_slice %78 {offsets = [16, 0], sizes = [8, 128], strides = [1, 1]} : vector<32x128xf32> to vector<8x128xf32>
      %82 = vector.extract_strided_slice %78 {offsets = [24, 0], sizes = [8, 128], strides = [1, 1]} : vector<32x128xf32> to vector<8x128xf32>
      %83 = arith.addf %79, %80 : vector<8x128xf32>
      %84 = arith.addf %81, %82 : vector<8x128xf32>
      %85 = arith.addf %83, %84 : vector<8x128xf32>
      %86 = arith.addf %16, %85 : vector<8x128xf32>
      %c2 = arith.constant 2 : index
      %c0_29 = arith.constant 0 : index
      %c0_30 = arith.constant 0 : index
      %87 = vector.load %arg2[%c2, %c0_29, %c0_30] : memref<4x32x128xf32, #tpu.memory_space<vmem>>, vector<1x32x128xf32>
      %88 = vector.shape_cast %87 : vector<1x32x128xf32> to vector<32x128xf32>
      %89 = arith.subf %88, %20 : vector<32x128xf32>
      %cst_31 = arith.constant 0.000000e+00 : f32
      %90 = vector.broadcast %cst_31 : f32 to vector<32x128xf32>
      %91 = arith.select %31, %89, %90 : vector<32x128xi1>, vector<32x128xf32>
      %92 = math.absf %91 : vector<32x128xf32>
      %cst_32 = arith.constant 1.000000e+00 : f32
      %93 = vector.broadcast %cst_32 : f32 to vector<32x128xf32>
      %94 = arith.cmpf olt, %92, %93 : vector<32x128xf32>
      %cst_33 = arith.constant 5.000000e-01 : f32
      %95 = vector.broadcast %cst_33 : f32 to vector<32x128xf32>
      %96 = arith.mulf %95, %91 : vector<32x128xf32>
      %97 = arith.mulf %96, %91 : vector<32x128xf32>
      %cst_34 = arith.constant 5.000000e-01 : f32
      %98 = vector.broadcast %cst_34 : f32 to vector<32x128xf32>
      %99 = arith.subf %92, %98 : vector<32x128xf32>
      %100 = arith.select %94, %97, %99 : vector<32x128xi1>, vector<32x128xf32>
      %101 = vector.extract_strided_slice %100 {offsets = [0, 0], sizes = [8, 128], strides = [1, 1]} : vector<32x128xf32> to vector<8x128xf32>
      %102 = vector.extract_strided_slice %100 {offsets = [8, 0], sizes = [8, 128], strides = [1, 1]} : vector<32x128xf32> to vector<8x128xf32>
      %103 = vector.extract_strided_slice %100 {offsets = [16, 0], sizes = [8, 128], strides = [1, 1]} : vector<32x128xf32> to vector<8x128xf32>
      %104 = vector.extract_strided_slice %100 {offsets = [24, 0], sizes = [8, 128], strides = [1, 1]} : vector<32x128xf32> to vector<8x128xf32>
      %105 = arith.addf %101, %102 : vector<8x128xf32>
      %106 = arith.addf %103, %104 : vector<8x128xf32>
      %107 = arith.addf %105, %106 : vector<8x128xf32>
      %108 = arith.addf %17, %107 : vector<8x128xf32>
      %c3 = arith.constant 3 : index
      %c0_35 = arith.constant 0 : index
      %c0_36 = arith.constant 0 : index
      %109 = vector.load %arg2[%c3, %c0_35, %c0_36] : memref<4x32x128xf32, #tpu.memory_space<vmem>>, vector<1x32x128xf32>
      %110 = vector.shape_cast %109 : vector<1x32x128xf32> to vector<32x128xf32>
      %111 = arith.subf %110, %20 : vector<32x128xf32>
      %cst_37 = arith.constant 0.000000e+00 : f32
      %112 = vector.broadcast %cst_37 : f32 to vector<32x128xf32>
      %113 = arith.select %31, %111, %112 : vector<32x128xi1>, vector<32x128xf32>
      %114 = math.absf %113 : vector<32x128xf32>
      %cst_38 = arith.constant 1.000000e+00 : f32
      %115 = vector.broadcast %cst_38 : f32 to vector<32x128xf32>
      %116 = arith.cmpf olt, %114, %115 : vector<32x128xf32>
      %cst_39 = arith.constant 5.000000e-01 : f32
      %117 = vector.broadcast %cst_39 : f32 to vector<32x128xf32>
      %118 = arith.mulf %117, %113 : vector<32x128xf32>
      %119 = arith.mulf %118, %113 : vector<32x128xf32>
      %cst_40 = arith.constant 5.000000e-01 : f32
      %120 = vector.broadcast %cst_40 : f32 to vector<32x128xf32>
      %121 = arith.subf %114, %120 : vector<32x128xf32>
      %122 = arith.select %116, %119, %121 : vector<32x128xi1>, vector<32x128xf32>
      %123 = vector.extract_strided_slice %122 {offsets = [0, 0], sizes = [8, 128], strides = [1, 1]} : vector<32x128xf32> to vector<8x128xf32>
      %124 = vector.extract_strided_slice %122 {offsets = [8, 0], sizes = [8, 128], strides = [1, 1]} : vector<32x128xf32> to vector<8x128xf32>
      %125 = vector.extract_strided_slice %122 {offsets = [16, 0], sizes = [8, 128], strides = [1, 1]} : vector<32x128xf32> to vector<8x128xf32>
      %126 = vector.extract_strided_slice %122 {offsets = [24, 0], sizes = [8, 128], strides = [1, 1]} : vector<32x128xf32> to vector<8x128xf32>
      %127 = arith.addf %123, %124 : vector<8x128xf32>
      %128 = arith.addf %125, %126 : vector<8x128xf32>
      %129 = arith.addf %127, %128 : vector<8x128xf32>
      %130 = arith.addf %18, %129 : vector<8x128xf32>
      %c0_41 = arith.constant 0 : index
      %c0_42 = arith.constant 0 : index
      %c0_43 = arith.constant 0 : index
      %c0_44 = arith.constant 0 : index
      %131 = vector.load %arg4[%c0_41, %c0_42, %c0_43, %c0_44] : memref<1x5x8x128xf32, #tpu.memory_space<vmem>>, vector<1x1x8x128xf32>
      %132 = vector.shape_cast %131 : vector<1x1x8x128xf32> to vector<8x128xf32>
      %133 = arith.addf %132, %64 : vector<8x128xf32>
      %c0_45 = arith.constant 0 : index
      %c0_46 = arith.constant 0 : index
      %c0_47 = arith.constant 0 : index
      %c0_48 = arith.constant 0 : index
      %134 = vector.load %arg4[%c0_45, %c0_46, %c0_47, %c0_48] : memref<1x5x8x128xf32, #tpu.memory_space<vmem>>, vector<1x1x8x128xf32>
      %135 = vector.shape_cast %134 : vector<1x1x8x128xf32> to vector<8x128xf32>
      %136 = vector.shape_cast %133 : vector<8x128xf32> to vector<1x1x8x128xf32>
      tpu.vector_store %arg4[%c0_45, %c0_46, %c0_47, %c0_48], %136 {strides = array<i32>} : memref<1x5x8x128xf32, #tpu.memory_space<vmem>>, vector<1x1x8x128xf32>,
      %c0_49 = arith.constant 0 : index
      %c1_50 = arith.constant 1 : index
      %c0_51 = arith.constant 0 : index
      %c0_52 = arith.constant 0 : index
      %137 = vector.load %arg4[%c0_49, %c1_50, %c0_51, %c0_52] : memref<1x5x8x128xf32, #tpu.memory_space<vmem>>, vector<1x1x8x128xf32>
      %138 = vector.shape_cast %137 : vector<1x1x8x128xf32> to vector<8x128xf32>
      %139 = arith.addf %138, %86 : vector<8x128xf32>
      %c0_53 = arith.constant 0 : index
      %c1_54 = arith.constant 1 : index
      %c0_55 = arith.constant 0 : index
      %c0_56 = arith.constant 0 : index
      %140 = vector.load %arg4[%c0_53, %c1_54, %c0_55, %c0_56] : memref<1x5x8x128xf32, #tpu.memory_space<vmem>>, vector<1x1x8x128xf32>
      %141 = vector.shape_cast %140 : vector<1x1x8x128xf32> to vector<8x128xf32>
      %142 = vector.shape_cast %139 : vector<8x128xf32> to vector<1x1x8x128xf32>
      tpu.vector_store %arg4[%c0_53, %c1_54, %c0_55, %c0_56], %142 {strides = array<i32>} : memref<1x5x8x128xf32, #tpu.memory_space<vmem>>, vector<1x1x8x128xf32>,
      %c0_57 = arith.constant 0 : index
      %c2_58 = arith.constant 2 : index
      %c0_59 = arith.constant 0 : index
      %c0_60 = arith.constant 0 : index
      %143 = vector.load %arg4[%c0_57, %c2_58, %c0_59, %c0_60] : memref<1x5x8x128xf32, #tpu.memory_space<vmem>>, vector<1x1x8x128xf32>
      %144 = vector.shape_cast %143 : vector<1x1x8x128xf32> to vector<8x128xf32>
      %145 = arith.addf %144, %108 : vector<8x128xf32>
      %c0_61 = arith.constant 0 : index
      %c2_62 = arith.constant 2 : index
      %c0_63 = arith.constant 0 : index
      %c0_64 = arith.constant 0 : index
      %146 = vector.load %arg4[%c0_61, %c2_62, %c0_63, %c0_64] : memref<1x5x8x128xf32, #tpu.memory_space<vmem>>, vector<1x1x8x128xf32>
      %147 = vector.shape_cast %146 : vector<1x1x8x128xf32> to vector<8x128xf32>
      %148 = vector.shape_cast %145 : vector<8x128xf32> to vector<1x1x8x128xf32>
      tpu.vector_store %arg4[%c0_61, %c2_62, %c0_63, %c0_64], %148 {strides = array<i32>} : memref<1x5x8x128xf32, #tpu.memory_space<vmem>>, vector<1x1x8x128xf32>,
      %c0_65 = arith.constant 0 : index
      %c3_66 = arith.constant 3 : index
      %c0_67 = arith.constant 0 : index
      %c0_68 = arith.constant 0 : index
      %149 = vector.load %arg4[%c0_65, %c3_66, %c0_67, %c0_68] : memref<1x5x8x128xf32, #tpu.memory_space<vmem>>, vector<1x1x8x128xf32>
      %150 = vector.shape_cast %149 : vector<1x1x8x128xf32> to vector<8x128xf32>
      %151 = arith.addf %150, %130 : vector<8x128xf32>
      %c0_69 = arith.constant 0 : index
      %c3_70 = arith.constant 3 : index
      %c0_71 = arith.constant 0 : index
      %c0_72 = arith.constant 0 : index
      %152 = vector.load %arg4[%c0_69, %c3_70, %c0_71, %c0_72] : memref<1x5x8x128xf32, #tpu.memory_space<vmem>>, vector<1x1x8x128xf32>
      %153 = vector.shape_cast %152 : vector<1x1x8x128xf32> to vector<8x128xf32>
      %154 = vector.shape_cast %151 : vector<8x128xf32> to vector<1x1x8x128xf32>
      tpu.vector_store %arg4[%c0_69, %c3_70, %c0_71, %c0_72], %154 {strides = array<i32>} : memref<1x5x8x128xf32, #tpu.memory_space<vmem>>, vector<1x1x8x128xf32>,
      %c0_73 = arith.constant 0 : index
      %c4 = arith.constant 4 : index
      %c0_74 = arith.constant 0 : index
      %c0_75 = arith.constant 0 : index
      %155 = vector.load %arg4[%c0_73, %c4, %c0_74, %c0_75] : memref<1x5x8x128xf32, #tpu.memory_space<vmem>>, vector<1x1x8x128xf32>
      %156 = vector.shape_cast %155 : vector<1x1x8x128xf32> to vector<8x128xf32>
      %157 = arith.addf %156, %42 : vector<8x128xf32>
      %c0_76 = arith.constant 0 : index
      %c4_77 = arith.constant 4 : index
      %c0_78 = arith.constant 0 : index
      %c0_79 = arith.constant 0 : index
      %158 = vector.load %arg4[%c0_76, %c4_77, %c0_78, %c0_79] : memref<1x5x8x128xf32, #tpu.memory_space<vmem>>, vector<1x1x8x128xf32>
      %159 = vector.shape_cast %158 : vector<1x1x8x128xf32> to vector<8x128xf32>
      %160 = vector.shape_cast %157 : vector<8x128xf32> to vector<1x1x8x128xf32>
      tpu.vector_store %arg4[%c0_76, %c4_77, %c0_78, %c0_79], %160 {strides = array<i32>} : memref<1x5x8x128xf32, #tpu.memory_space<vmem>>, vector<1x1x8x128xf32>,
    } else {
    }
    return
  }
  func.func @transform_0(%arg0: i32, %arg1: i32) -> (i32, i32, i32) {
    %c1_i32 = arith.constant 1 : i32
    %0 = arith.muli %arg0, %c1_i32 : i32
    %1 = arith.addi %0, %arg1 : i32
    %c0_i32 = arith.constant 0 : i32
    %c0_i32_0 = arith.constant 0 : i32
    %c0_i32_1 = arith.constant 0 : i32
    return %c0_i32, %1, %c0_i32_0 : i32, i32, i32
  }
  func.func @transform_1(%arg0: i32, %arg1: i32) -> (i32, i32) {
    %c1_i32 = arith.constant 1 : i32
    %0 = arith.muli %arg0, %c1_i32 : i32
    %1 = arith.addi %0, %arg1 : i32
    %c0_i32 = arith.constant 0 : i32
    %c0_i32_0 = arith.constant 0 : i32
    return %1, %c0_i32 : i32, i32
  }
  func.func @transform_2(%arg0: i32, %arg1: i32) -> (i32, i32, i32, i32) {
    %c0_i32 = arith.constant 0 : i32
    %c0_i32_0 = arith.constant 0 : i32
    %c0_i32_1 = arith.constant 0 : i32
    %c0_i32_2 = arith.constant 0 : i32
    return %arg0, %c0_i32, %c0_i32_0, %c0_i32_1 : i32, i32, i32, i32
  }
}

</mosaic_0001>

<llo_original>
// kernel: gwcnet_loss.1
$region0: #{gwcnet_loss.1}
  #allocation0 [shape = 'u32[]', space=smem, size = 0x4, offset = 0x4, fixed_abs, tag = 'smem constant byte address 0x4 - core index']
  #allocation1 [shape = 'u32[144,128]{1,0:T(1,128)}', space=vmem, size = 0x12000, scoped, tag = 'internal scratch']
  %s0 = inlined_call_operand.vmem [shape: f32[4,4,128], index: 0, kind: input, shape index: {}]
  %s1 = inlined_call_operand.vmem [shape: f32[4,128], index: 1, kind: input, shape index: {}]
  %s2 = inlined_call_operand.vmem [shape: f32[1,5,8,128], index: 2, kind: output, shape index: {}]
  %s3 = sld [smem:[#allocation0]]
  $region71: #{gwcnet_loss.1} parent=0
    _
  %s5 = ssub.s32 1, %s3
  %s6 = scalar_select 0, %s5, %s3
  $region1: #{gwcnet_loss.1} parent=0
    #allocation2 [shape = 'u8[65536]{0}', space=vmem, size = 0x10000, scoped, tag = 'input window, operand 0, single buffered']
    // Predicated region
    $region2: #{gwcnet_loss.1} parent=1 // pred_check
      _
    $region3: #{gwcnet_loss.1} parent=1 // pred_check_branch
      %8 = sbr.rel (0) target = $region5
    $region4: #{gwcnet_loss.1} parent=1 // pred_region
      %s9 = sadd.s32 0, 0
      %s10 = smul.u32 8, %s9
      %s11 = ssub.s32 1, %s10
      %s12 = smul.u32 256, %s11
      %p13 = scmp.ne.s32.totalorder 0, %s12
      %s14 = smul.addr %s10, 4
      %s15 = scalar_lea.vmem %s0, %s14
      // Predicated region
      $region6: #{gwcnet_loss.1} parent=4 // pred_check
        %p16 = pneg %p13
      $region7: #{gwcnet_loss.1} parent=4 // pred_check_branch
        %18 = sbr.rel (%p16) target = $region9
      $region8: #{gwcnet_loss.1} parent=4 // pred_region
        // Predicated region
        $region10: #{gwcnet_loss.1} parent=8 // pred_check
          _
        $region11: #{gwcnet_loss.1} parent=8 // pred_check_branch
          %20 = sbr.rel target = $region13
        $region12: #{gwcnet_loss.1} parent=8 // pred_region
          // Predicated region
          $region25: #{gwcnet_loss.1} parent=12 // pred_check
            _
          $region26: #{gwcnet_loss.1} parent=12 // pred_check_branch
            %49 = sbr.rel (0) target = $region28
          $region27: #{gwcnet_loss.1} parent=12 // pred_region
            // While loop
            $region29: #{gwcnet_loss.1} parent=27 // loop_pre_header
              _
            $region30: #{gwcnet_loss.1} parent=27 // loop_header
              %s51 = sphi 0, %s53
              %p52 = scmp.ge.s32.totalorder %s51, %s11
              %s56 = sphi 0, %s61
              %s57 = sphi %s15, %s64
              %s58 = sphi [#allocation2], %s65
            $region31: #{gwcnet_loss.1} parent=27 // loop_header_branch
              %55 = sbr.rel (%p52) target = $region35
            $region32: #{gwcnet_loss.1} parent=27 // loop_body
              %s59 = sadd.s32 1, %s56
              %p60 = scmp.ge.s32.totalorder %s59, %s11
              %s61 = scalar_select %p60, 0, %s59
              %s62 = smul.u32 %s61, 4
              %s63 = smul.u32 %s61, 4
              %s64 = scalar_lea.vmem %s15, %s62
              %s65 = scalar_lea.vmem [#allocation2], %s63
            $region33: #{gwcnet_loss.1} parent=27 // loop_footer
              %s53 = sadd.s32 %s51, 1
            $region34: #{gwcnet_loss.1} parent=27 // loop_footer_branch
              %50 = sbr.rel target = $region30
            $region35: #{gwcnet_loss.1} parent=27 // loop_exit
              _
            // While loop
            $region36: #{gwcnet_loss.1} parent=27 // loop_pre_header
              _
            $region37: #{gwcnet_loss.1} parent=27 // loop_header
              %s68 = sphi 0, %s70
              %p69 = scmp.ge.s32.totalorder %s68, %s11
              %s73 = sphi 0, %s86
              %s74 = sphi %s15, %s89
              %s75 = sphi [#allocation2], %s90
            $region38: #{gwcnet_loss.1} parent=27 // loop_header_branch
              %72 = sbr.rel (%p69) target = $region42
            $region39: #{gwcnet_loss.1} parent=27 // loop_body
              %v76 = vld [vmem:[%s74] sm:$0xf]
              %77 = vst [vmem:[%s75] sm:$0xf] %v76
              %v78 = vld [vmem:[%s74 + $0x4] sm:$0xf]
              %79 = vst [vmem:[%s75 + $0x20] sm:$0xf] %v78
              %v80 = vld [vmem:[%s74 + $0x8] sm:$0xf]
              %81 = vst [vmem:[%s75 + $0x40] sm:$0xf] %v80
              %v82 = vld [vmem:[%s74 + $0xc] sm:$0xf]
              %83 = vst [vmem:[%s75 + $0x60] sm:$0xf] %v82
              %s84 = sadd.s32 1, %s73
              %p85 = scmp.ge.s32.totalorder %s84, %s11
              %s86 = scalar_select %p85, 0, %s84
              %s87 = smul.u32 %s86, 4
              %s88 = smul.u32 %s86, 4
              %s89 = scalar_lea.vmem %s15, %s87
              %s90 = scalar_lea.vmem [#allocation2], %s88
            $region40: #{gwcnet_loss.1} parent=27 // loop_footer
              %s70 = sadd.s32 %s68, 1
            $region41: #{gwcnet_loss.1} parent=27 // loop_footer_branch
              %67 = sbr.rel target = $region37
            $region42: #{gwcnet_loss.1} parent=27 // loop_exit
              _
          $region28: #{gwcnet_loss.1} parent=12 // pred_fallthru
            _
        $region13: #{gwcnet_loss.1} parent=8 // pred_fallthru
          _
        // Predicated region
        $region14: #{gwcnet_loss.1} parent=8 // pred_check
          _
        $region15: #{gwcnet_loss.1} parent=8 // pred_check_branch
          %22 = sbr.rel (0) target = $region17
        $region16: #{gwcnet_loss.1} parent=8 // pred_region
          // While loop
          $region18: #{gwcnet_loss.1} parent=16 // loop_pre_header
            _
          $region19: #{gwcnet_loss.1} parent=16 // loop_header
            %s25 = sphi 0, %s27
            %p26 = scmp.ge.s32.totalorder %s25, %s11
            %s30 = sphi 0, %s43
            %s31 = sphi %s15, %s46
            %s32 = sphi [#allocation2], %s47
          $region20: #{gwcnet_loss.1} parent=16 // loop_header_branch
            %29 = sbr.rel (%p26) target = $region24
          $region21: #{gwcnet_loss.1} parent=16 // loop_body
            %v33 = vld [vmem:[%s31] sm:$0xf]
            %34 = vst [vmem:[%s32] sm:$0xf] %v33
            %v35 = vld [vmem:[%s31 + $0x4] sm:$0xf]
            %36 = vst [vmem:[%s32 + $0x20] sm:$0xf] %v35
            %v37 = vld [vmem:[%s31 + $0x8] sm:$0xf]
            %38 = vst [vmem:[%s32 + $0x40] sm:$0xf] %v37
            %v39 = vld [vmem:[%s31 + $0xc] sm:$0xf]
            %40 = vst [vmem:[%s32 + $0x60] sm:$0xf] %v39
            %s41 = sadd.s32 1, %s30
            %p42 = scmp.ge.s32.totalorder %s41, %s11
            %s43 = scalar_select %p42, 0, %s41
            %s44 = smul.u32 %s43, 4
            %s45 = smul.u32 %s43, 4
            %s46 = scalar_lea.vmem %s15, %s44
            %s47 = scalar_lea.vmem [#allocation2], %s45
          $region22: #{gwcnet_loss.1} parent=16 // loop_footer
            %s27 = sadd.s32 %s25, 1
          $region23: #{gwcnet_loss.1} parent=16 // loop_footer_branch
            %24 = sbr.rel target = $region19
          $region24: #{gwcnet_loss.1} parent=16 // loop_exit
            _
        $region17: #{gwcnet_loss.1} parent=8 // pred_fallthru
          _
      $region9: #{gwcnet_loss.1} parent=4 // pred_fallthru
        _
      %91 = vnop
    $region5: #{gwcnet_loss.1} parent=1 // pred_fallthru
      _
    // Predicated region
    $region43: #{gwcnet_loss.1} parent=1 // pred_check
      _
    $region44: #{gwcnet_loss.1} parent=1 // pred_check_branch
      %93 = sbr.rel (0) target = $region46
    $region45: #{gwcnet_loss.1} parent=1 // pred_region
      %s94 = sadd.s32 0, 0
      %s95 = smul.u32 8, %s94
      %s96 = ssub.s32 1, %s95
      %s97 = smul.u32 64, %s96
      %p98 = scmp.lt.s32.totalorder %s95, 0
      %s99 = scalar_select %p98, %s95, 0
      %s100 = smul.addr %s99, 4
      %s101 = scalar_lea.vmem %s1, %s100
      %s102 = sadd.s32 0, 0
      %s103 = smul.u32 8, %s102
      %s104 = ssub.s32 1, %s103
      %s105 = smul.u32 64, %s104
    $region46: #{gwcnet_loss.1} parent=1 // pred_fallthru
      _
    // Predicated region
    $region47: #{gwcnet_loss.1} parent=1 // pred_check
      _
    $region48: #{gwcnet_loss.1} parent=1 // pred_check_branch
      %107 = sbr.rel (0) target = $region50
    $region49: #{gwcnet_loss.1} parent=1 // pred_region
      _
    $region50: #{gwcnet_loss.1} parent=1 // pred_fallthru
      _
    %s108 = sadd.s32 0, 0
    %s109 = smul.u32 8, %s108
    %s110 = ssub.s32 1, %s109
    %s111 = smul.u32 64, %s110
    %p112 = scmp.lt.s32.totalorder %s109, 0
    %s113 = scalar_select %p112, %s109, 0
    %s114 = smul.addr %s113, 4
    %s115 = scalar_lea.vmem %s1, %s114
    %s116 = sadd.s32 0, 0
    %s117 = smul.u32 8, %s116
    %s118 = ssub.s32 1, %s117
    %s119 = smul.u32 256, %s118
    %s120 = sadd.s32 0, 0
    %s121 = smul.u32 8, %s120
    %s122 = ssub.s32 1, %s121
    %s123 = smul.u32 64, %s122
    %p124 = scmp.lt.s32.totalorder %s121, 0
    %s125 = scalar_select %p124, %s121, 0
    %s126 = smul.addr %s125, 4
    %s127 = scalar_lea.vmem %s1, %s126
    %s128 = sadd.s32 0, 0
    %s129 = smul.u32 8, %s128
    %s130 = ssub.s32 1, %s129
    %s131 = smul.u32 64, %s130
    %p132 = scmp.eq.s32.totalorder 0, 0
    // Predicated region
    $region51: #{gwcnet_loss.1} parent=1 // pred_check
      %p133 = pneg %p132
    $region52: #{gwcnet_loss.1} parent=1 // pred_check_branch
      %135 = sbr.rel (%p133) target = $region54
    $region53: #{gwcnet_loss.1} parent=1 // pred_region
      %136 = vst [vmem:[%s2] sm:$0xff] 0.0
      %137 = vst [vmem:[%s2 + $0x8] sm:$0xff] 0.0
      %138 = vst [vmem:[%s2 + $0x10] sm:$0xff] 0.0
      %139 = vst [vmem:[%s2 + $0x18] sm:$0xff] 0.0
      %140 = vst [vmem:[%s2 + $0x20] sm:$0xff] 0.0
    $region54: #{gwcnet_loss.1} parent=1 // pred_fallthru
      _
    %s141 = sadd.s32 0, 0
    %s142 = smul.u32 %s141, 32
    %s143 = ssub.s32 4, %s142
    %p144 = scmp.ge.s32.totalorder %s143, 32
    // Predicated region
    $region55: #{gwcnet_loss.1} parent=1 // pred_check
      %p145 = pneg %p144
    $region56: #{gwcnet_loss.1} parent=1 // pred_check_branch
      %147 = sbr.rel (%p145) target = $region58
    $region57: #{gwcnet_loss.1} parent=1 // pred_region
      %v148 = vld [vmem:[%s127] sm:$0xff]
      %v149 = vld [vmem:[%s127 + $0x8] sm:$0xff]
      %v150 = vld [vmem:[%s127 + $0x10] sm:$0xff]
      %v151 = vld [vmem:[%s127 + $0x18] sm:$0xff]
      %vm152 = vcmp.gt.f32.partialorder %v148, 0.0
      %vm153 = vcmp.gt.f32.partialorder %v149, 0.0
      %vm154 = vcmp.gt.f32.partialorder %v150, 0.0
      %vm155 = vcmp.gt.f32.partialorder %v151, 0.0
      %vm156 = vcmp.lt.f32.partialorder %v148, 192.0
      %vm157 = vcmp.lt.f32.partialorder %v149, 192.0
      %vm158 = vcmp.lt.f32.partialorder %v150, 192.0
      %vm159 = vcmp.lt.f32.partialorder %v151, 192.0
      %vm160 = vmand %vm152, %vm156
      %vm161 = vmand %vm153, %vm157
      %vm162 = vmand %vm154, %vm158
      %vm163 = vmand %vm155, %vm159
      %v164 = vsel %vm160, 1.0, 0.0
      %v165 = vsel %vm161, 1.0, 0.0
      %v166 = vsel %vm162, 1.0, 0.0
      %v167 = vsel %vm163, 1.0, 0.0
      %v168 = vadd.f32 %v164, %v165
      %v169 = vadd.f32 %v166, %v167
      %v170 = vadd.f32 %v168, %v169
      %v171 = vadd.f32 %v170, 0.0
      %v172 = vld [vmem:[#allocation2] sm:$0xff]
      %v173 = vld [vmem:[#allocation2 + $0x8] sm:$0xff]
      %v174 = vld [vmem:[#allocation2 + $0x10] sm:$0xff]
      %v175 = vld [vmem:[#allocation2 + $0x18] sm:$0xff]
      %v176 = vsub.f32 %v172, %v148
      %v177 = vsub.f32 %v173, %v149
      %v178 = vsub.f32 %v174, %v150
      %v179 = vsub.f32 %v175, %v151
      %v180 = vsel %vm160, %v176, 0.0
      %v181 = vsel %vm161, %v177, 0.0
      %v182 = vsel %vm162, %v178, 0.0
      %v183 = vsel %vm163, %v179, 0.0
      %v184 = vand.u32 2147483647, %v180
      %v185 = vand.u32 2147483647, %v181
      %v186 = vand.u32 2147483647, %v182
      %v187 = vand.u32 2147483647, %v183
      %vm188 = vcmp.lt.f32.partialorder %v184, 1.0
      %vm189 = vcmp.lt.f32.partialorder %v185, 1.0
      %vm190 = vcmp.lt.f32.partialorder %v186, 1.0
      %vm191 = vcmp.lt.f32.partialorder %v187, 1.0
      %v192 = vmul.f32 %v180, 0.5
      %v193 = vmul.f32 %v181, 0.5
      %v194 = vmul.f32 %v182, 0.5
      %v195 = vmul.f32 %v183, 0.5
      %v196 = vmul.f32 %v192, %v180
      %v197 = vmul.f32 %v193, %v181
      %v198 = vmul.f32 %v194, %v182
      %v199 = vmul.f32 %v195, %v183
      %v200 = vsub.f32 %v184, 0.5
      %v201 = vsub.f32 %v185, 0.5
      %v202 = vsub.f32 %v186, 0.5
      %v203 = vsub.f32 %v187, 0.5
      %v204 = vsel %vm188, %v196, %v200
      %v205 = vsel %vm189, %v197, %v201
      %v206 = vsel %vm190, %v198, %v202
      %v207 = vsel %vm191, %v199, %v203
      %v208 = vadd.f32 %v204, %v205
      %v209 = vadd.f32 %v206, %v207
      %v210 = vadd.f32 %v208, %v209
      %v211 = vadd.f32 %v210, 0.0
      %s212 = scalar_lea.vmem [#allocation2], 32
      %v213 = vld [vmem:[%s212] sm:$0xff]
      %v214 = vld [vmem:[%s212 + $0x8] sm:$0xff]
      %v215 = vld [vmem:[%s212 + $0x10] sm:$0xff]
      %v216 = vld [vmem:[%s212 + $0x18] sm:$0xff]
      %v217 = vsub.f32 %v213, %v148
      %v218 = vsub.f32 %v214, %v149
      %v219 = vsub.f32 %v215, %v150
      %v220 = vsub.f32 %v216, %v151
      %v221 = vsel %vm160, %v217, 0.0
      %v222 = vsel %vm161, %v218, 0.0
      %v223 = vsel %vm162, %v219, 0.0
      %v224 = vsel %vm163, %v220, 0.0
      %v225 = vand.u32 2147483647, %v221
      %v226 = vand.u32 2147483647, %v222
      %v227 = vand.u32 2147483647, %v223
      %v228 = vand.u32 2147483647, %v224
      %vm229 = vcmp.lt.f32.partialorder %v225, 1.0
      %vm230 = vcmp.lt.f32.partialorder %v226, 1.0
      %vm231 = vcmp.lt.f32.partialorder %v227, 1.0
      %vm232 = vcmp.lt.f32.partialorder %v228, 1.0
      %v233 = vmul.f32 %v221, 0.5
      %v234 = vmul.f32 %v222, 0.5
      %v235 = vmul.f32 %v223, 0.5
      %v236 = vmul.f32 %v224, 0.5
      %v237 = vmul.f32 %v233, %v221
      %v238 = vmul.f32 %v234, %v222
      %v239 = vmul.f32 %v235, %v223
      %v240 = vmul.f32 %v236, %v224
      %v241 = vsub.f32 %v225, 0.5
      %v242 = vsub.f32 %v226, 0.5
      %v243 = vsub.f32 %v227, 0.5
      %v244 = vsub.f32 %v228, 0.5
      %v245 = vsel %vm229, %v237, %v241
      %v246 = vsel %vm230, %v238, %v242
      %v247 = vsel %vm231, %v239, %v243
      %v248 = vsel %vm232, %v240, %v244
      %v249 = vadd.f32 %v245, %v246
      %v250 = vadd.f32 %v247, %v248
      %v251 = vadd.f32 %v249, %v250
      %v252 = vadd.f32 %v251, 0.0
      %s253 = scalar_lea.vmem [#allocation2], 64
      %v254 = vld [vmem:[%s253] sm:$0xff]
      %v255 = vld [vmem:[%s253 + $0x8] sm:$0xff]
      %v256 = vld [vmem:[%s253 + $0x10] sm:$0xff]
      %v257 = vld [vmem:[%s253 + $0x18] sm:$0xff]
      %v258 = vsub.f32 %v254, %v148
      %v259 = vsub.f32 %v255, %v149
      %v260 = vsub.f32 %v256, %v150
      %v261 = vsub.f32 %v257, %v151
      %v262 = vsel %vm160, %v258, 0.0
      %v263 = vsel %vm161, %v259, 0.0
      %v264 = vsel %vm162, %v260, 0.0
      %v265 = vsel %vm163, %v261, 0.0
      %v266 = vand.u32 2147483647, %v262
      %v267 = vand.u32 2147483647, %v263
      %v268 = vand.u32 2147483647, %v264
      %v269 = vand.u32 2147483647, %v265
      %vm270 = vcmp.lt.f32.partialorder %v266, 1.0
      %vm271 = vcmp.lt.f32.partialorder %v267, 1.0
      %vm272 = vcmp.lt.f32.partialorder %v268, 1.0
      %vm273 = vcmp.lt.f32.partialorder %v269, 1.0
      %v274 = vmul.f32 %v262, 0.5
      %v275 = vmul.f32 %v263, 0.5
      %v276 = vmul.f32 %v264, 0.5
      %v277 = vmul.f32 %v265, 0.5
      %v278 = vmul.f32 %v274, %v262
      %v279 = vmul.f32 %v275, %v263
      %v280 = vmul.f32 %v276, %v264
      %v281 = vmul.f32 %v277, %v265
      %v282 = vsub.f32 %v266, 0.5
      %v283 = vsub.f32 %v267, 0.5
      %v284 = vsub.f32 %v268, 0.5
      %v285 = vsub.f32 %v269, 0.5
      %v286 = vsel %vm270, %v278, %v282
      %v287 = vsel %vm271, %v279, %v283
      %v288 = vsel %vm272, %v280, %v284
      %v289 = vsel %vm273, %v281, %v285
      %v290 = vadd.f32 %v286, %v287
      %v291 = vadd.f32 %v288, %v289
      %v292 = vadd.f32 %v290, %v291
      %v293 = vadd.f32 %v292, 0.0
      %s294 = scalar_lea.vmem [#allocation2], 96
      %v295 = vld [vmem:[%s294] sm:$0xff]
      %v296 = vld [vmem:[%s294 + $0x8] sm:$0xff]
      %v297 = vld [vmem:[%s294 + $0x10] sm:$0xff]
      %v298 = vld [vmem:[%s294 + $0x18] sm:$0xff]
      %v299 = vsub.f32 %v295, %v148
      %v300 = vsub.f32 %v296, %v149
      %v301 = vsub.f32 %v297, %v150
      %v302 = vsub.f32 %v298, %v151
      %v303 = vsel %vm160, %v299, 0.0
      %v304 = vsel %vm161, %v300, 0.0
      %v305 = vsel %vm162, %v301, 0.0
      %v306 = vsel %vm163, %v302, 0.0
      %v307 = vand.u32 2147483647, %v303
      %v308 = vand.u32 2147483647, %v304
      %v309 = vand.u32 2147483647, %v305
      %v310 = vand.u32 2147483647, %v306
      %vm311 = vcmp.lt.f32.partialorder %v307, 1.0
      %vm312 = vcmp.lt.f32.partialorder %v308, 1.0
      %vm313 = vcmp.lt.f32.partialorder %v309, 1.0
      %vm314 = vcmp.lt.f32.partialorder %v310, 1.0
      %v315 = vmul.f32 %v303, 0.5
      %v316 = vmul.f32 %v304, 0.5
      %v317 = vmul.f32 %v305, 0.5
      %v318 = vmul.f32 %v306, 0.5
      %v319 = vmul.f32 %v315, %v303
      %v320 = vmul.f32 %v316, %v304
      %v321 = vmul.f32 %v317, %v305
      %v322 = vmul.f32 %v318, %v306
      %v323 = vsub.f32 %v307, 0.5
      %v324 = vsub.f32 %v308, 0.5
      %v325 = vsub.f32 %v309, 0.5
      %v326 = vsub.f32 %v310, 0.5
      %v327 = vsel %vm311, %v319, %v323
      %v328 = vsel %vm312, %v320, %v324
      %v329 = vsel %vm313, %v321, %v325
      %v330 = vsel %vm314, %v322, %v326
      %v331 = vadd.f32 %v327, %v328
      %v332 = vadd.f32 %v329, %v330
      %v333 = vadd.f32 %v331, %v332
      %v334 = vadd.f32 %v333, 0.0
      %v335 = vld [vmem:[%s2] sm:$0xff]
      %v336 = vadd.f32 %v335, %v211
      %337 = vst [vmem:[%s2] sm:$0xff] %v336
      %s338 = scalar_lea.vmem %s2, 8
      %v339 = vld [vmem:[%s338] sm:$0xff]
      %v340 = vadd.f32 %v339, %v252
      %341 = vst [vmem:[%s338] sm:$0xff] %v340
      %s342 = scalar_lea.vmem %s2, 16
      %v343 = vld [vmem:[%s342] sm:$0xff]
      %v344 = vadd.f32 %v343, %v293
      %345 = vst [vmem:[%s342] sm:$0xff] %v344
      %s346 = scalar_lea.vmem %s2, 24
      %v347 = vld [vmem:[%s346] sm:$0xff]
      %v348 = vadd.f32 %v347, %v334
      %349 = vst [vmem:[%s346] sm:$0xff] %v348
      %s350 = scalar_lea.vmem %s2, 32
      %v351 = vld [vmem:[%s350] sm:$0xff]
      %v352 = vadd.f32 %v351, %v171
      %353 = vst [vmem:[%s350] sm:$0xff] %v352
    $region58: #{gwcnet_loss.1} parent=1 // pred_fallthru
      _
    %p354 = scmp.gt.s32.totalorder %s143, 0
    %p355 = scmp.lt.s32.totalorder %s143, 32
    %p356 = pnand %p354, %p355
    %p357 = pneg %p356
    // Predicated region
    $region59: #{gwcnet_loss.1} parent=1 // pred_check
      _
    $region60: #{gwcnet_loss.1} parent=1 // pred_check_branch
      %359 = sbr.rel (%p356) target = $region62
    $region61: #{gwcnet_loss.1} parent=1 // pred_region
      %v360 = vld [vmem:[%s127] sm:$0xff]
      %v361 = vld [vmem:[%s127 + $0x8] sm:$0xff]
      %v362 = vld [vmem:[%s127 + $0x10] sm:$0xff]
      %v363 = vld [vmem:[%s127 + $0x18] sm:$0xff]
      %vm364 = vcmp.gt.f32.partialorder %v360, 0.0
      %vm365 = vcmp.gt.f32.partialorder %v361, 0.0
      %vm366 = vcmp.gt.f32.partialorder %v362, 0.0
      %vm367 = vcmp.gt.f32.partialorder %v363, 0.0
      %vm368 = vcmp.lt.f32.partialorder %v360, 192.0
      %vm369 = vcmp.lt.f32.partialorder %v361, 192.0
      %vm370 = vcmp.lt.f32.partialorder %v362, 192.0
      %vm371 = vcmp.lt.f32.partialorder %v363, 192.0
      %vm372 = vmand %vm364, %vm368
      %vm373 = vmand %vm365, %vm369
      %vm374 = vmand %vm366, %vm370
      %vm375 = vmand %vm367, %vm371
      %v376 = vlaneseq
      %v377 = vshrl.u32 %v376, 7
      %v378 = vadd.s32 %v377, 8
      %v379 = vadd.s32 %v377, 16
      %v380 = vadd.s32 %v377, 24
      %v381 = vstv %s143
      %vm382 = vcmp.lt.s32.totalorder %v377, %v381
      %vm383 = vcmp.lt.s32.totalorder %v378, %v381
      %vm384 = vcmp.lt.s32.totalorder %v379, %v381
      %vm385 = vcmp.lt.s32.totalorder %v380, %v381
      %vm386 = vmand %vm372, %vm382
      %vm387 = vmand %vm373, %vm383
      %vm388 = vmand %vm374, %vm384
      %vm389 = vmand %vm375, %vm385
      %v390 = vsel %vm386, 1.0, 0.0
      %v391 = vsel %vm387, 1.0, 0.0
      %v392 = vsel %vm388, 1.0, 0.0
      %v393 = vsel %vm389, 1.0, 0.0
      %v394 = vadd.f32 %v390, %v391
      %v395 = vadd.f32 %v392, %v393
      %v396 = vadd.f32 %v394, %v395
      %v397 = vadd.f32 %v396, 0.0
      %v398 = vld [vmem:[#allocation2] sm:$0xff]
      %v399 = vld [vmem:[#allocation2 + $0x8] sm:$0xff]
      %v400 = vld [vmem:[#allocation2 + $0x10] sm:$0xff]
      %v401 = vld [vmem:[#allocation2 + $0x18] sm:$0xff]
      %v402 = vsub.f32 %v398, %v360
      %v403 = vsub.f32 %v399, %v361
      %v404 = vsub.f32 %v400, %v362
      %v405 = vsub.f32 %v401, %v363
      %v406 = vsel %vm386, %v402, 0.0
      %v407 = vsel %vm387, %v403, 0.0
      %v408 = vsel %vm388, %v404, 0.0
      %v409 = vsel %vm389, %v405, 0.0
      %v410 = vand.u32 2147483647, %v406
      %v411 = vand.u32 2147483647, %v407
      %v412 = vand.u32 2147483647, %v408
      %v413 = vand.u32 2147483647, %v409
      %vm414 = vcmp.lt.f32.partialorder %v410, 1.0
      %vm415 = vcmp.lt.f32.partialorder %v411, 1.0
      %vm416 = vcmp.lt.f32.partialorder %v412, 1.0
      %vm417 = vcmp.lt.f32.partialorder %v413, 1.0
      %v418 = vmul.f32 %v406, 0.5
      %v419 = vmul.f32 %v407, 0.5
      %v420 = vmul.f32 %v408, 0.5
      %v421 = vmul.f32 %v409, 0.5
      %v422 = vmul.f32 %v418, %v406
      %v423 = vmul.f32 %v419, %v407
      %v424 = vmul.f32 %v420, %v408
      %v425 = vmul.f32 %v421, %v409
      %v426 = vsub.f32 %v410, 0.5
      %v427 = vsub.f32 %v411, 0.5
      %v428 = vsub.f32 %v412, 0.5
      %v429 = vsub.f32 %v413, 0.5
      %v430 = vsel %vm414, %v422, %v426
      %v431 = vsel %vm415, %v423, %v427
      %v432 = vsel %vm416, %v424, %v428
      %v433 = vsel %vm417, %v425, %v429
      %v434 = vadd.f32 %v430, %v431
      %v435 = vadd.f32 %v432, %v433
      %v436 = vadd.f32 %v434, %v435
      %v437 = vadd.f32 %v436, 0.0
      %s438 = scalar_lea.vmem [#allocation2], 32
      %v439 = vld [vmem:[%s438] sm:$0xff]
      %v440 = vld [vmem:[%s438 + $0x8] sm:$0xff]
      %v441 = vld [vmem:[%s438 + $0x10] sm:$0xff]
      %v442 = vld [vmem:[%s438 + $0x18] sm:$0xff]
      %v443 = vsub.f32 %v439, %v360
      %v444 = vsub.f32 %v440, %v361
      %v445 = vsub.f32 %v441, %v362
      %v446 = vsub.f32 %v442, %v363
      %v447 = vsel %vm386, %v443, 0.0
      %v448 = vsel %vm387, %v444, 0.0
      %v449 = vsel %vm388, %v445, 0.0
      %v450 = vsel %vm389, %v446, 0.0
      %v451 = vand.u32 2147483647, %v447
      %v452 = vand.u32 2147483647, %v448
      %v453 = vand.u32 2147483647, %v449
      %v454 = vand.u32 2147483647, %v450
      %vm455 = vcmp.lt.f32.partialorder %v451, 1.0
      %vm456 = vcmp.lt.f32.partialorder %v452, 1.0
      %vm457 = vcmp.lt.f32.partialorder %v453, 1.0
      %vm458 = vcmp.lt.f32.partialorder %v454, 1.0
      %v459 = vmul.f32 %v447, 0.5
      %v460 = vmul.f32 %v448, 0.5
      %v461 = vmul.f32 %v449, 0.5
      %v462 = vmul.f32 %v450, 0.5
      %v463 = vmul.f32 %v459, %v447
      %v464 = vmul.f32 %v460, %v448
      %v465 = vmul.f32 %v461, %v449
      %v466 = vmul.f32 %v462, %v450
      %v467 = vsub.f32 %v451, 0.5
      %v468 = vsub.f32 %v452, 0.5
      %v469 = vsub.f32 %v453, 0.5
      %v470 = vsub.f32 %v454, 0.5
      %v471 = vsel %vm455, %v463, %v467
      %v472 = vsel %vm456, %v464, %v468
      %v473 = vsel %vm457, %v465, %v469
      %v474 = vsel %vm458, %v466, %v470
      %v475 = vadd.f32 %v471, %v472
      %v476 = vadd.f32 %v473, %v474
      %v477 = vadd.f32 %v475, %v476
      %v478 = vadd.f32 %v477, 0.0
      %s479 = scalar_lea.vmem [#allocation2], 64
      %v480 = vld [vmem:[%s479] sm:$0xff]
      %v481 = vld [vmem:[%s479 + $0x8] sm:$0xff]
      %v482 = vld [vmem:[%s479 + $0x10] sm:$0xff]
      %v483 = vld [vmem:[%s479 + $0x18] sm:$0xff]
      %v484 = vsub.f32 %v480, %v360
      %v485 = vsub.f32 %v481, %v361
      %v486 = vsub.f32 %v482, %v362
      %v487 = vsub.f32 %v483, %v363
      %v488 = vsel %vm386, %v484, 0.0
      %v489 = vsel %vm387, %v485, 0.0
      %v490 = vsel %vm388, %v486, 0.0
      %v491 = vsel %vm389, %v487, 0.0
      %v492 = vand.u32 2147483647, %v488
      %v493 = vand.u32 2147483647, %v489
      %v494 = vand.u32 2147483647, %v490
      %v495 = vand.u32 2147483647, %v491
      %vm496 = vcmp.lt.f32.partialorder %v492, 1.0
      %vm497 = vcmp.lt.f32.partialorder %v493, 1.0
      %vm498 = vcmp.lt.f32.partialorder %v494, 1.0
      %vm499 = vcmp.lt.f32.partialorder %v495, 1.0
      %v500 = vmul.f32 %v488, 0.5
      %v501 = vmul.f32 %v489, 0.5
      %v502 = vmul.f32 %v490, 0.5
      %v503 = vmul.f32 %v491, 0.5
      %v504 = vmul.f32 %v500, %v488
      %v505 = vmul.f32 %v501, %v489
      %v506 = vmul.f32 %v502, %v490
      %v507 = vmul.f32 %v503, %v491
      %v508 = vsub.f32 %v492, 0.5
      %v509 = vsub.f32 %v493, 0.5
      %v510 = vsub.f32 %v494, 0.5
      %v511 = vsub.f32 %v495, 0.5
      %v512 = vsel %vm496, %v504, %v508
      %v513 = vsel %vm497, %v505, %v509
      %v514 = vsel %vm498, %v506, %v510
      %v515 = vsel %vm499, %v507, %v511
      %v516 = vadd.f32 %v512, %v513
      %v517 = vadd.f32 %v514, %v515
      %v518 = vadd.f32 %v516, %v517
      %v519 = vadd.f32 %v518, 0.0
      %s520 = scalar_lea.vmem [#allocation2], 96
      %v521 = vld [vmem:[%s520] sm:$0xff]
      %v522 = vld [vmem:[%s520 + $0x8] sm:$0xff]
      %v523 = vld [vmem:[%s520 + $0x10] sm:$0xff]
      %v524 = vld [vmem:[%s520 + $0x18] sm:$0xff]
      %v525 = vsub.f32 %v521, %v360
      %v526 = vsub.f32 %v522, %v361
      %v527 = vsub.f32 %v523, %v362
      %v528 = vsub.f32 %v524, %v363
      %v529 = vsel %vm386, %v525, 0.0
      %v530 = vsel %vm387, %v526, 0.0
      %v531 = vsel %vm388, %v527, 0.0
      %v532 = vsel %vm389, %v528, 0.0
      %v533 = vand.u32 2147483647, %v529
      %v534 = vand.u32 2147483647, %v530
      %v535 = vand.u32 2147483647, %v531
      %v536 = vand.u32 2147483647, %v532
      %vm537 = vcmp.lt.f32.partialorder %v533, 1.0
      %vm538 = vcmp.lt.f32.partialorder %v534, 1.0
      %vm539 = vcmp.lt.f32.partialorder %v535, 1.0
      %vm540 = vcmp.lt.f32.partialorder %v536, 1.0
      %v541 = vmul.f32 %v529, 0.5
      %v542 = vmul.f32 %v530, 0.5
      %v543 = vmul.f32 %v531, 0.5
      %v544 = vmul.f32 %v532, 0.5
      %v545 = vmul.f32 %v541, %v529
      %v546 = vmul.f32 %v542, %v530
      %v547 = vmul.f32 %v543, %v531
      %v548 = vmul.f32 %v544, %v532
      %v549 = vsub.f32 %v533, 0.5
      %v550 = vsub.f32 %v534, 0.5
      %v551 = vsub.f32 %v535, 0.5
      %v552 = vsub.f32 %v536, 0.5
      %v553 = vsel %vm537, %v545, %v549
      %v554 = vsel %vm538, %v546, %v550
      %v555 = vsel %vm539, %v547, %v551
      %v556 = vsel %vm540, %v548, %v552
      %v557 = vadd.f32 %v553, %v554
      %v558 = vadd.f32 %v555, %v556
      %v559 = vadd.f32 %v557, %v558
      %v560 = vadd.f32 %v559, 0.0
      %v561 = vld [vmem:[%s2] sm:$0xff]
      %v562 = vadd.f32 %v561, %v437
      %563 = vst [vmem:[%s2] sm:$0xff] %v562
      %s564 = scalar_lea.vmem %s2, 8
      %v565 = vld [vmem:[%s564] sm:$0xff]
      %v566 = vadd.f32 %v565, %v478
      %567 = vst [vmem:[%s564] sm:$0xff] %v566
      %s568 = scalar_lea.vmem %s2, 16
      %v569 = vld [vmem:[%s568] sm:$0xff]
      %v570 = vadd.f32 %v569, %v519
      %571 = vst [vmem:[%s568] sm:$0xff] %v570
      %s572 = scalar_lea.vmem %s2, 24
      %v573 = vld [vmem:[%s572] sm:$0xff]
      %v574 = vadd.f32 %v573, %v560
      %575 = vst [vmem:[%s572] sm:$0xff] %v574
      %s576 = scalar_lea.vmem %s2, 32
      %v577 = vld [vmem:[%s576] sm:$0xff]
      %v578 = vadd.f32 %v577, %v397
      %579 = vst [vmem:[%s576] sm:$0xff] %v578
    $region62: #{gwcnet_loss.1} parent=1 // pred_fallthru
      _
    // Predicated region
    $region63: #{gwcnet_loss.1} parent=1 // pred_check
      _
    $region64: #{gwcnet_loss.1} parent=1 // pred_check_branch
      %581 = sbr.rel (0) target = $region66
    $region65: #{gwcnet_loss.1} parent=1 // pred_region
      _
    $region66: #{gwcnet_loss.1} parent=1 // pred_fallthru
      _
    // Predicated region
    $region67: #{gwcnet_loss.1} parent=1 // pred_check
      _
    $region68: #{gwcnet_loss.1} parent=1 // pred_check_branch
      %583 = sbr.rel (0) target = $region70
    $region69: #{gwcnet_loss.1} parent=1 // pred_region
      _
    $region70: #{gwcnet_loss.1} parent=1 // pred_fallthru
      _

</llo_original>
